<compile_context>
chip_gen: v5e
topology: v5e:2x2
jax: 0.10.0
libtpu: 0.0.40
codegen_flags: <defaults>
</compile_context>

<pallas_src>
import jax
import jax.numpy as jnp
from jax import lax
from jax.experimental import pallas as pl
from jax.experimental.pallas import tpu as pltpu

TEMPERATURE = 0.1
EPS = 1e-12  # matches torch.nn.functional.normalize default eps


def _decoupling_loss_kernel(tu_ref, tsh_ref, t_ref, out_ref):
    # tu_ref / tsh_ref / t_ref: (1, N, E) blocks; out_ref: (1, 1, 1) block.
    tu = tu_ref[0].astype(jnp.float32)
    tsh = tsh_ref[0].astype(jnp.float32)
    t = t_ref[0].astype(jnp.float32)

    def l2_normalize(x):
        # F.normalize(x, p=2, dim=1): x / max(||x||_2, eps)  (eps^2 = 1e-24 is
        # still a normal f32, so clamping the squared norm is equivalent).
        ss = jnp.sum(x * x, axis=1, keepdims=True)
        return x * lax.rsqrt(jnp.maximum(ss, EPS * EPS))

    tu = l2_normalize(tu)
    tsh = l2_normalize(tsh)
    t = l2_normalize(t)

    # mean(log(diag(exp(tab_shared @ ts.T / T)))) == mean(rowwise dot) / T
    # (log o exp elided; diag(A @ B.T) == sum(A * B, axis=1)).
    mean_log_diag = jnp.mean(
        jnp.sum(tsh * t, axis=1, keepdims=True)) / TEMPERATURE

    # sim_unique = tab_unique @ ts.T, contracting on E (no explicit transpose).
    sim_unique = lax.dot_general(
        tu, t,
        dimension_numbers=(((1,), (1,)), ((), ())),
        preferred_element_type=jnp.float32)                          # (N, N)
    sim_unique = jnp.exp(sim_unique / TEMPERATURE)

    rowsum = jnp.sum(sim_unique, axis=1, keepdims=True)              # (N, 1)
    colsum = jnp.sum(sim_unique, axis=0, keepdims=True)              # (1, N)

    # -mean(log(diag / sum)) == mean(log(sum)) - mean_log_diag
    loss_unique_ts = jnp.mean(jnp.log(rowsum)) - mean_log_diag
    loss_ts_unique = jnp.mean(jnp.log(colsum)) - mean_log_diag

    loss = (loss_unique_ts + loss_ts_unique) * 0.5
    out_ref[...] = jnp.full((1, 1, 1), loss, dtype=jnp.float32)


def decoupling_loss(tab_unique, tab_shared, ts):
    """Pallas DecouplingLoss forward.

    Accepts a single triple of (N, E) embeddings (returns a scalar, matching
    the PyTorch module) or a batch of triples as (B, N, E) (returns (B,)).
    """
    single = tab_unique.ndim == 2
    if single:
        tab_unique = tab_unique[None]
        tab_shared = tab_shared[None]
        ts = ts[None]

    B, N, E = tab_unique.shape
    itemsize = jnp.dtype(tab_unique.dtype).itemsize
    cost = pl.CostEstimate(
        flops=int(B * (2 * N * N * E + 8 * N * E)),
        transcendentals=int(B * (N * N + 5 * N)),
        bytes_accessed=int(B * (3 * N * E * itemsize + 4)),
    )

    in_spec = pl.BlockSpec((1, N, E), lambda b: (b, 0, 0))
    out = pl.pallas_call(
        _decoupling_loss_kernel,
        out_shape=jax.ShapeDtypeStruct((B, 1, 1), jnp.float32),
        grid=(B,),
        in_specs=[in_spec, in_spec, in_spec],
        out_specs=pl.BlockSpec((1, 1, 1), lambda b: (b, 0, 0)),
        compiler_params=pltpu.CompilerParams(
            # Independent triples -> shard the batch across both TCs on v7x.
            dimension_semantics=("parallel",),
            # Tiny working set (~few KiB per step, double-buffered); keep VMEM
            # headroom for neighbors (v7x has only 64 MiB per TC).
            vmem_limit_bytes=4 * 1024 * 1024),
        cost_estimate=cost,
    )(tab_unique, tab_shared, ts)

    out = out.reshape(B)
    return out[0] if single else out


def _reference(tab_unique, tab_shared, ts):
    """Pure-JAX reference mirroring the PyTorch DecouplingLoss module."""
    def norm(x):
        n = jnp.sqrt(jnp.sum(x * x, axis=1, keepdims=True))
        return x / jnp.maximum(n, EPS)

    tu, tsh, t = norm(tab_unique), norm(tab_shared), norm(ts)
    sim_shared = jnp.exp((tsh @ t.T) / TEMPERATURE)
    sim_unique = jnp.exp((tu @ t.T) / TEMPERATURE)
    d = jnp.diag(sim_shared)
    loss_unique_ts = -jnp.mean(jnp.log(d / jnp.sum(sim_unique, axis=1)))
    loss_ts_unique = -jnp.mean(jnp.log(d / jnp.sum(sim_unique, axis=0)))
    return (loss_unique_ts + loss_ts_unique) / 2


if __name__ == "__main__":
    N, E = 8, 32
    key = jax.random.PRNGKey(0)

    # --- single triple (matches the nn.Module forward signature) ------------
    k1, k2, k3, k4 = jax.random.split(key, 4)
    tab_unique = jax.random.normal(k1, (N, E), dtype=jnp.float32)
    tab_shared = jax.random.normal(k2, (N, E), dtype=jnp.float32)
    ts = jax.random.normal(k3, (N, E), dtype=jnp.float32)

    loss = decoupling_loss(tab_unique, tab_shared, ts)
    jax.block_until_ready(loss)
    ref = _reference(tab_unique, tab_shared, ts)
    assert jnp.allclose(loss, ref, rtol=1e-5, atol=1e-5), (loss, ref)

    # --- batched triples (grid axis amortizes launch cost, parallel on v7x) --
    B = 4
    kb1, kb2, kb3 = jax.random.split(k4, 3)
    bu = jax.random.normal(kb1, (B, N, E), dtype=jnp.float32)
    bs = jax.random.normal(kb2, (B, N, E), dtype=jnp.float32)
    bt = jax.random.normal(kb3, (B, N, E), dtype=jnp.float32)

    batched = decoupling_loss(bu, bs, bt)
    jax.block_until_ready(batched)
    for b in range(B):
        rb = _reference(bu[b], bs[b], bt[b])
        assert jnp.allclose(batched[b], rb, rtol=1e-5, atol=1e-5), (b, batched[b], rb)

    print("KERNEL_OK")
</pallas_src>

<mosaic_0001>
module attributes {stable_mosaic.version = 11 : i64} {
  func.func @_decoupling_loss_kernel(%arg0: i32, %arg1: memref<1x8x32xf32, #tpu.memory_space<vmem>>, %arg2: memref<1x8x32xf32, #tpu.memory_space<vmem>>, %arg3: memref<1x8x32xf32, #tpu.memory_space<vmem>>, %arg4: memref<1x1x1xf32, #tpu.memory_space<vmem>>) attributes {dimension_semantics = [#tpu.dimension_semantics<parallel>], iteration_bounds = array<i64: 1>, scalar_prefetch = 0 : i64, scratch_operands = 0 : i64, tpu.core_type = #tpu.core_type<tc>, window_params = [{transform_indices = @transform_0, window_bounds = array<i64: 1, 8, 32>}, {transform_indices = @transform_1, window_bounds = array<i64: 1, 8, 32>}, {transform_indices = @transform_2, window_bounds = array<i64: 1, 8, 32>}, {transform_indices = @transform_3, window_bounds = array<i64: 1, 1, 1>}]} {
    %c0 = arith.constant 0 : index
    %c0_0 = arith.constant 0 : index
    %c0_1 = arith.constant 0 : index
    %0 = vector.load %arg1[%c0, %c0_0, %c0_1] : memref<1x8x32xf32, #tpu.memory_space<vmem>>, vector<1x8x32xf32>
    %1 = vector.shape_cast %0 : vector<1x8x32xf32> to vector<8x32xf32>
    %c0_2 = arith.constant 0 : index
    %c0_3 = arith.constant 0 : index
    %c0_4 = arith.constant 0 : index
    %2 = vector.load %arg2[%c0_2, %c0_3, %c0_4] : memref<1x8x32xf32, #tpu.memory_space<vmem>>, vector<1x8x32xf32>
    %3 = vector.shape_cast %2 : vector<1x8x32xf32> to vector<8x32xf32>
    %c0_5 = arith.constant 0 : index
    %c0_6 = arith.constant 0 : index
    %c0_7 = arith.constant 0 : index
    %4 = vector.load %arg3[%c0_5, %c0_6, %c0_7] : memref<1x8x32xf32, #tpu.memory_space<vmem>>, vector<1x8x32xf32>
    %5 = vector.shape_cast %4 : vector<1x8x32xf32> to vector<8x32xf32>
    %6 = arith.mulf %1, %1 : vector<8x32xf32>
    %cst = arith.constant dense<0.000000e+00> : vector<8xf32>
    %7 = vector.multi_reduction <add>, %6, %cst [1] : vector<8x32xf32> to vector<8xf32>
    %8 = vector.shape_cast %7 : vector<8xf32> to vector<8x1xf32>
    %cst_8 = arith.constant 1.000000e-24 : f32
    %9 = vector.broadcast %cst_8 : f32 to vector<8x1xf32>
    %10 = arith.maximumf %8, %9 : vector<8x1xf32>
    %11 = math.rsqrt %10 : vector<8x1xf32>
    %12 = vector.broadcast %11 : vector<8x1xf32> to vector<8x32xf32>
    %13 = arith.mulf %1, %12 : vector<8x32xf32>
    %14 = arith.mulf %3, %3 : vector<8x32xf32>
    %cst_9 = arith.constant dense<0.000000e+00> : vector<8xf32>
    %15 = vector.multi_reduction <add>, %14, %cst_9 [1] : vector<8x32xf32> to vector<8xf32>
    %16 = vector.shape_cast %15 : vector<8xf32> to vector<8x1xf32>
    %cst_10 = arith.constant 1.000000e-24 : f32
    %17 = vector.broadcast %cst_10 : f32 to vector<8x1xf32>
    %18 = arith.maximumf %16, %17 : vector<8x1xf32>
    %19 = math.rsqrt %18 : vector<8x1xf32>
    %20 = vector.broadcast %19 : vector<8x1xf32> to vector<8x32xf32>
    %21 = arith.mulf %3, %20 : vector<8x32xf32>
    %22 = arith.mulf %5, %5 : vector<8x32xf32>
    %cst_11 = arith.constant dense<0.000000e+00> : vector<8xf32>
    %23 = vector.multi_reduction <add>, %22, %cst_11 [1] : vector<8x32xf32> to vector<8xf32>
    %24 = vector.shape_cast %23 : vector<8xf32> to vector<8x1xf32>
    %cst_12 = arith.constant 1.000000e-24 : f32
    %25 = vector.broadcast %cst_12 : f32 to vector<8x1xf32>
    %26 = arith.maximumf %24, %25 : vector<8x1xf32>
    %27 = math.rsqrt %26 : vector<8x1xf32>
    %28 = vector.broadcast %27 : vector<8x1xf32> to vector<8x32xf32>
    %29 = arith.mulf %5, %28 : vector<8x32xf32>
    %30 = arith.mulf %21, %29 : vector<8x32xf32>
    %cst_13 = arith.constant dense<0.000000e+00> : vector<8xf32>
    %31 = vector.multi_reduction <add>, %30, %cst_13 [1] : vector<8x32xf32> to vector<8xf32>
    %32 = vector.shape_cast %31 : vector<8xf32> to vector<8x1xf32>
    %33 = vector.shape_cast %32 : vector<8x1xf32> to vector<1x8x1xf32>
    %cst_14 = arith.constant dense<0.000000e+00> : vector<1xf32>
    %34 = vector.multi_reduction <add>, %33, %cst_14 [1, 2] : vector<1x8x1xf32> to vector<1xf32>
    %35 = vector.shape_cast %34 : vector<1xf32> to vector<1x1x1xf32>
    %36 = vector.extract %35[0, 0, 0] : f32 from vector<1x1x1xf32>
    %cst_15 = arith.constant 8.000000e+00 : f32
    %37 = arith.divf %36, %cst_15 : f32
    %cst_16 = arith.constant 1.000000e-01 : f32
    %38 = arith.divf %37, %cst_16 : f32
    %cst_17 = arith.constant dense<0.000000e+00> : vector<8x8xf32>
    %39 = tpu.matmul %13, %29, %cst_17 {dimension_numbers = #tpu.dot_dimension_numbers<[1], [1], [0], [0], [0, 0, 1, 0], [], []>} : vector<8x32xf32>, vector<8x32xf32>, vector<8x8xf32> -> vector<8x8xf32>
    %cst_18 = arith.constant 1.000000e-01 : f32
    %40 = vector.broadcast %cst_18 : f32 to vector<8x8xf32>
    %41 = arith.divf %39, %40 : vector<8x8xf32>
    %42 = math.exp %41 : vector<8x8xf32>
    %cst_19 = arith.constant dense<0.000000e+00> : vector<8xf32>
    %43 = vector.multi_reduction <add>, %42, %cst_19 [1] : vector<8x8xf32> to vector<8xf32>
    %44 = vector.shape_cast %43 : vector<8xf32> to vector<8x1xf32>
    %cst_20 = arith.constant dense<0.000000e+00> : vector<8xf32>
    %45 = vector.multi_reduction <add>, %42, %cst_20 [0] : vector<8x8xf32> to vector<8xf32>
    %46 = vector.shape_cast %45 : vector<8xf32> to vector<1x8xf32>
    %47 = math.log %44 : vector<8x1xf32>
    %48 = vector.shape_cast %47 : vector<8x1xf32> to vector<1x8x1xf32>
    %cst_21 = arith.constant dense<0.000000e+00> : vector<1xf32>
    %49 = vector.multi_reduction <add>, %48, %cst_21 [1, 2] : vector<1x8x1xf32> to vector<1xf32>
    %50 = vector.shape_cast %49 : vector<1xf32> to vector<1x1x1xf32>
    %51 = vector.extract %50[0, 0, 0] : f32 from vector<1x1x1xf32>
    %cst_22 = arith.constant 8.000000e+00 : f32
    %52 = arith.divf %51, %cst_22 : f32
    %53 = arith.subf %52, %38 : f32
    %54 = math.log %46 : vector<1x8xf32>
    %55 = vector.shape_cast %54 : vector<1x8xf32> to vector<1x1x8xf32>
    %cst_23 = arith.constant dense<0.000000e+00> : vector<1xf32>
    %56 = vector.multi_reduction <add>, %55, %cst_23 [1, 2] : vector<1x1x8xf32> to vector<1xf32>
    %57 = vector.shape_cast %56 : vector<1xf32> to vector<1x1x1xf32>
    %58 = vector.extract %57[0, 0, 0] : f32 from vector<1x1x1xf32>
    %cst_24 = arith.constant 8.000000e+00 : f32
    %59 = arith.divf %58, %cst_24 : f32
    %60 = arith.subf %59, %38 : f32
    %61 = arith.addf %53, %60 : f32
    %cst_25 = arith.constant 5.000000e-01 : f32
    %62 = arith.mulf %61, %cst_25 : f32
    %63 = vector.broadcast %62 : f32 to vector<1x1x1xf32>
    %c0_26 = arith.constant 0 : index
    %c0_27 = arith.constant 0 : index
    %c0_28 = arith.constant 0 : index
    %64 = vector.load %arg4[%c0_26, %c0_27, %c0_28] : memref<1x1x1xf32, #tpu.memory_space<vmem>>, vector<1x1x1xf32>
    tpu.vector_store %arg4[%c0_26, %c0_27, %c0_28], %63 {strides = array<i32>} : memref<1x1x1xf32, #tpu.memory_space<vmem>>, vector<1x1x1xf32>,
    return
  }
  func.func @transform_0(%arg0: i32) -> (i32, i32, i32) {
    %c0_i32 = arith.constant 0 : i32
    %c0_i32_0 = arith.constant 0 : i32
    %c0_i32_1 = arith.constant 0 : i32
    return %arg0, %c0_i32, %c0_i32_0 : i32, i32, i32
  }
  func.func @transform_1(%arg0: i32) -> (i32, i32, i32) {
    %c0_i32 = arith.constant 0 : i32
    %c0_i32_0 = arith.constant 0 : i32
    %c0_i32_1 = arith.constant 0 : i32
    return %arg0, %c0_i32, %c0_i32_0 : i32, i32, i32
  }
  func.func @transform_2(%arg0: i32) -> (i32, i32, i32) {
    %c0_i32 = arith.constant 0 : i32
    %c0_i32_0 = arith.constant 0 : i32
    %c0_i32_1 = arith.constant 0 : i32
    return %arg0, %c0_i32, %c0_i32_0 : i32, i32, i32
  }
  func.func @transform_3(%arg0: i32) -> (i32, i32, i32) {
    %c0_i32 = arith.constant 0 : i32
    %c0_i32_0 = arith.constant 0 : i32
    %c0_i32_1 = arith.constant 0 : i32
    return %arg0, %c0_i32, %c0_i32_0 : i32, i32, i32
  }
}

</mosaic_0001>

<llo_original>
// kernel: tpu_custom_call.1
$region0: #{tpu_custom_call.1}
  #allocation0 [shape = 'u32[]', space=smem, size = 0x4, offset = 0x4, fixed_abs, tag = 'smem constant byte address 0x4 - core index']
  #allocation1 [shape = 'u32[72,128]{1,0:T(1,128)}', space=vmem, size = 0x9000, scoped, tag = 'internal scratch']
  %s0 = inlined_call_operand.hbm [shape: f32[1,8,32], index: 0, kind: input, shape index: {}]
  %s1 = inlined_call_operand.hbm [shape: f32[1,8,32], index: 1, kind: input, shape index: {}]
  %s2 = inlined_call_operand.hbm [shape: f32[1,8,32], index: 2, kind: input, shape index: {}]
  %s3 = inlined_call_operand.hbm [shape: f32[1,1,1], index: 3, kind: output, shape index: {}]
  %s4 = sld [smem:[#allocation0]]
  $region34: #{tpu_custom_call.1} parent=0
    _
  %s6 = ssub.s32 1, %s4
  %s7 = scalar_select 0, %s6, %s4
  $region1: #{tpu_custom_call.1} parent=0
    #allocation2 [shape = 'u8[4096]{0}', space=vmem, size = 0x1000, scoped, tag = 'input window, operand 0, single buffered']
    #allocation3 [shape = 's32[1]{0}', space=sflag, size = 0x4, scoped, tag = 'scoped memory for tpu_custom_call.1']
    #allocation4 [shape = 's32[1]{0}', space=sflag, size = 0x4, scoped, tag = 'scoped memory for tpu_custom_call.1']
    #allocation5 [shape = 'u8[4096]{0}', space=vmem, size = 0x1000, scoped, tag = 'input window, operand 1, single buffered']
    #allocation6 [shape = 's32[1]{0}', space=sflag, size = 0x4, scoped, tag = 'scoped memory for tpu_custom_call.1']
    #allocation7 [shape = 'u8[4096]{0}', space=vmem, size = 0x1000, scoped, tag = 'input window, operand 2, single buffered']
    #allocation8 [shape = 'u8[512]{0}', space=vmem, size = 0x400, scoped, tag = 'output window, operand 0, single buffered']
    %8 = vsyncpa [#allocation3], 0
    %9 = vsyncpa [#allocation6], 0
    %10 = vsyncpa [#allocation4], 0
    // Predicated region
    $region2: #{tpu_custom_call.1} parent=1 // pred_check
      _
    $region3: #{tpu_custom_call.1} parent=1 // pred_check_branch
      %12 = sbr.rel (0) target = $region5
    $region4: #{tpu_custom_call.1} parent=1 // pred_region
      %14 = vsyncadd [#allocation3], 0
      %s16 = sshll.u32 %s0, 4
      %s17 = int_to_ptr.hbm [resolvable:$true] %s16
      %s18 = sshll.u32 [#allocation2], 4
      %s19 = int_to_ptr.vmem [resolvable:$true] %s18
      %21 = dma.hbm_to_vmem [thread:$0]  %s17, 128, %s19, [#allocation3]
    $region5: #{tpu_custom_call.1} parent=1 // pred_fallthru
      _
    // Predicated region
    $region6: #{tpu_custom_call.1} parent=1 // pred_check
      _
    $region7: #{tpu_custom_call.1} parent=1 // pred_check_branch
      %23 = sbr.rel (0) target = $region9
    $region8: #{tpu_custom_call.1} parent=1 // pred_region
      %25 = vsyncadd [#allocation6], 0
      %s27 = sshll.u32 %s1, 4
      %s28 = int_to_ptr.hbm [resolvable:$true] %s27
      %s29 = sshll.u32 [#allocation5], 4
      %s30 = int_to_ptr.vmem [resolvable:$true] %s29
      %32 = dma.hbm_to_vmem [thread:$0]  %s28, 128, %s30, [#allocation6]
    $region9: #{tpu_custom_call.1} parent=1 // pred_fallthru
      _
    // Predicated region
    $region10: #{tpu_custom_call.1} parent=1 // pred_check
      _
    $region11: #{tpu_custom_call.1} parent=1 // pred_check_branch
      %34 = sbr.rel (0) target = $region13
    $region12: #{tpu_custom_call.1} parent=1 // pred_region
      %36 = vsyncadd [#allocation6], 0
      %s38 = sshll.u32 %s2, 4
      %s39 = int_to_ptr.hbm [resolvable:$true] %s38
      %s40 = sshll.u32 [#allocation7], 4
      %s41 = int_to_ptr.vmem [resolvable:$true] %s40
      %43 = dma.hbm_to_vmem [thread:$0]  %s39, 128, %s41, [#allocation6]
    $region13: #{tpu_custom_call.1} parent=1 // pred_fallthru
      _
    // Predicated region
    $region14: #{tpu_custom_call.1} parent=1 // pred_check
      _
    $region15: #{tpu_custom_call.1} parent=1 // pred_check_branch
      %45 = sbr.rel (0) target = $region17
    $region16: #{tpu_custom_call.1} parent=1 // pred_region
      %47 = dma.done [#allocation3], 128
    $region17: #{tpu_custom_call.1} parent=1 // pred_fallthru
      _
    // Predicated region
    $region18: #{tpu_custom_call.1} parent=1 // pred_check
      _
    $region19: #{tpu_custom_call.1} parent=1 // pred_check_branch
      %49 = sbr.rel (0) target = $region21
    $region20: #{tpu_custom_call.1} parent=1 // pred_region
      %51 = dma.done [#allocation6], 128
    $region21: #{tpu_custom_call.1} parent=1 // pred_fallthru
      _
    // Predicated region
    $region22: #{tpu_custom_call.1} parent=1 // pred_check
      _
    $region23: #{tpu_custom_call.1} parent=1 // pred_check_branch
      %53 = sbr.rel (0) target = $region25
    $region24: #{tpu_custom_call.1} parent=1 // pred_region
      %55 = dma.done [#allocation6], 128
    $region25: #{tpu_custom_call.1} parent=1 // pred_fallthru
      _
    %v56 = vld [vmem:[#allocation2] sm:$0xff]
    %v57 = vld [vmem:[#allocation5] sm:$0xff]
    %v58 = vld [vmem:[#allocation7] sm:$0xff]
    %v59 = vmul.f32 %v56, %v56
    %vm60 = vcmask 261120
    %v61 = vsel %vm60, %v59, 0.0
    %62 = vadd.xlane.f32.xlu0 %v61
    %v63 = vpop.xlane.xlu0 %62
    %v64 = vmax.f32 %v63, 1e-24
    %v65 = vrsqrt.pop %v64
    %v66 = vmul.f32 %v65, %v64
    %v67 = vmul.f32 %v66, %v65
    %v68 = vmul.f32 0.5, %v67
    %v69 = vsub.f32 1.5, %v68
    %v70 = vmul.f32 %v65, %v69
    %vm71 = vweird.f32 %v64
    %vm72 = vweird.f32 %v65
    %vm73 = vmor %vm71, %vm72
    %v74 = vsel %vm73, %v65, %v70
    %v75 = vmul.f32 %v56, %v74
    %v76 = vmul.f32 %v57, %v57
    %v77 = vsel %vm60, %v76, 0.0
    %78 = vadd.xlane.f32.xlu0 %v77
    %v79 = vpop.xlane.xlu0 %78
    %v80 = vmax.f32 %v79, 1e-24
    %v81 = vrsqrt.pop %v80
    %v82 = vmul.f32 %v81, %v80
    %v83 = vmul.f32 %v82, %v81
    %v84 = vmul.f32 0.5, %v83
    %v85 = vsub.f32 1.5, %v84
    %v86 = vmul.f32 %v81, %v85
    %vm87 = vweird.f32 %v80
    %vm88 = vweird.f32 %v81
    %vm89 = vmor %vm87, %vm88
    %v90 = vsel %vm89, %v81, %v86
    %v91 = vmul.f32 %v57, %v90
    %v92 = vmul.f32 %v58, %v58
    %v93 = vsel %vm60, %v92, 0.0
    %94 = vadd.xlane.f32.xlu0 %v93
    %v95 = vpop.xlane.xlu0 %94
    %v96 = vmax.f32 %v95, 1e-24
    %v97 = vrsqrt.pop %v96
    %v98 = vmul.f32 %v97, %v96
    %v99 = vmul.f32 %v98, %v97
    %v100 = vmul.f32 0.5, %v99
    %v101 = vsub.f32 1.5, %v100
    %v102 = vmul.f32 %v97, %v101
    %vm103 = vweird.f32 %v96
    %vm104 = vweird.f32 %v97
    %vm105 = vmor %vm103, %vm104
    %v106 = vsel %vm105, %v97, %v102
    %v107 = vmul.f32 %v58, %v106
    %v108 = vmul.f32 %v91, %v107
    %v109 = vsel %vm60, %v108, 0.0
    %110 = vadd.xlane.f32.xlu0 %v109
    %v111 = vpop.xlane.xlu0 %110
    %vm112 = vcmask 7168
    %v113 = vsel %vm112, %v111, 0.0
    %114 = vadd.xlane.f32.xlu0 %v113
    %v115 = vpop.xlane.xlu0 %114
    %v116 = vrot.slane %v115, 4
    %v117 = vadd.f32 %v115, %v116
    %v118 = vrot.slane %v117, 2
    %v119 = vadd.f32 %v117, %v118
    %v120 = vrot.slane %v119, 1
    %v121 = vadd.f32 %v119, %v120
    %s122 = vtos %v121
    %v123 = vrcp.pop 8.0
    %v124 = vmul.f32 8.0, %v123
    %v125 = vsub.f32 1.0, %v124
    %v126 = vmul.f32 %v123, %v125
    %v127 = vadd.f32 %v123, %v126
    %vm128 = vweird.f32 %v123
    %v129 = vsel %vm128, %v123, %v127
    %s130 = vtos %v129
    %s131 = smul.f32 %s122, %s130
    %v132 = vrcp.pop 0.1
    %v133 = vmul.f32 0.1, %v132
    %v134 = vsub.f32 1.0, %v133
    %v135 = vmul.f32 %v132, %v134
    %v136 = vadd.f32 %v132, %v135
    %vm137 = vweird.f32 %v132
    %v138 = vsel %vm137, %v132, %v136
    %s139 = vtos %v138
    %s140 = smul.f32 %s131, %s139
    %v142 = vsel %vm60, %v75, 0
    %v145 = vsel %vm60, %v107, 0
    %147 = vmatpush.xpose.msra.mxu0 0.0
    %148 = vmatpush.xpose.msra.mxu0 0.0
    %149 = vmatpush.xpose.msra.mxu0 0.0
    %150 = vmatpush.xpose.msra.mxu0 0.0
    %151 = vmatpush.xpose.msra.mxu0 0.0
    %152 = vmatpush.xpose.msra.mxu0 0.0
    %153 = vmatpush.xpose.msra.mxu0 0.0
    %154 = vmatpush.xpose.msra.mxu0 0.0
    %155 = vmatpush.xpose.msra.mxu0 0.0
    %156 = vmatpush.xpose.msra.mxu0 0.0
    %157 = vmatpush.xpose.msra.mxu0 0.0
    %158 = vmatpush.xpose.msra.mxu0 0.0
    %159 = vmatpush.xpose.msra.mxu0 0.0
    %160 = vmatpush.xpose.msra.mxu0 0.0
    %161 = vmatpush.xpose.msra.mxu0 0.0
    %162 = vmatpush.xpose.msra.mxu0 %v145
    %163 = vmatmul.f32.gmra.mxu0 %v142
    %v164 = vpop.f32.mrf.mxu0
    %v165 = vadd.f32 0.0, %v164
    %166 = vdwg.mxu0
    %v167 = vrcp.pop 0.1
    %v168 = vmul.f32 0.1, %v167
    %v169 = vsub.f32 1.0, %v168
    %v170 = vmul.f32 %v167, %v169
    %v171 = vadd.f32 %v167, %v170
    %vm172 = vweird.f32 %v167
    %v173 = vsel %vm172, %v167, %v171
    %v174 = vmul.f32 %v165, %v173
    %v175 = vmul.f32 %v174, 1.442695
    %v176 = vpow.pop %v175
    %vm177 = vcmask 64512
    %v178 = vsel %vm177, %v176, 0.0
    %179 = vadd.xlane.f32.xlu0 %v178
    %v180 = vpop.xlane.xlu0 %179
    %v181 = vrot.slane %v178, 4
    %v182 = vadd.f32 %v178, %v181
    %v183 = vrot.slane %v182, 2
    %v184 = vadd.f32 %v182, %v183
    %v185 = vrot.slane %v184, 1
    %v186 = vadd.f32 %v184, %v185
    %v187 = vlog2.pop %v180
    %v188 = vmul.f32 %v187, 0.6931472
    %v189 = vsel %vm112, %v188, 0.0
    %190 = vadd.xlane.f32.xlu0 %v189
    %v191 = vpop.xlane.xlu0 %190
    %v192 = vrot.slane %v191, 4
    %v193 = vadd.f32 %v191, %v192
    %v194 = vrot.slane %v193, 2
    %v195 = vadd.f32 %v193, %v194
    %v196 = vrot.slane %v195, 1
    %v197 = vadd.f32 %v195, %v196
    %s198 = vtos %v197
    %v199 = vrcp.pop 8.0
    %v200 = vmul.f32 8.0, %v199
    %v201 = vsub.f32 1.0, %v200
    %v202 = vmul.f32 %v199, %v201
    %v203 = vadd.f32 %v199, %v202
    %vm204 = vweird.f32 %v199
    %v205 = vsel %vm204, %v199, %v203
    %s206 = vtos %v205
    %s207 = smul.f32 %s198, %s206
    %s208 = ssub.f32 %s207, %s140
    %v209 = vlog2.pop %v186
    %v210 = vmul.f32 %v209, 0.6931472
    %vm211 = vcmask 57344
    %v212 = vsel %vm211, %v210, 0.0
    %213 = vadd.xlane.f32.xlu0 %v212
    %v214 = vpop.xlane.xlu0 %213
    %v215 = vrot.slane %v214, 4
    %v216 = vadd.f32 %v214, %v215
    %v217 = vrot.slane %v216, 2
    %v218 = vadd.f32 %v216, %v217
    %v219 = vrot.slane %v218, 1
    %v220 = vadd.f32 %v218, %v219
    %s221 = vtos %v220
    %v222 = vrcp.pop 8.0
    %v223 = vmul.f32 8.0, %v222
    %v224 = vsub.f32 1.0, %v223
    %v225 = vmul.f32 %v222, %v224
    %v226 = vadd.f32 %v222, %v225
    %vm227 = vweird.f32 %v222
    %v228 = vsel %vm227, %v222, %v226
    %s229 = vtos %v228
    %s230 = smul.f32 %s221, %s229
    %s231 = ssub.f32 %s230, %s140
    %s232 = sadd.f32 %s208, %s231
    %s233 = smul.f32 %s232, 0.5
    %v234 = vstv %s233
    %vm235 = vcmask 0
    %236 = vst.msk [vmem:[#allocation8] sm:$0x1] %vm235, %v234
    // Predicated region
    $region26: #{tpu_custom_call.1} parent=1 // pred_check
      _
    $region27: #{tpu_custom_call.1} parent=1 // pred_check_branch
      %238 = sbr.rel (0) target = $region29
    $region28: #{tpu_custom_call.1} parent=1 // pred_region
      %240 = vsyncadd [#allocation4], 0
      %s242 = sshll.u32 [#allocation8], 4
      %s243 = int_to_ptr.vmem [resolvable:$true] %s242
      %s244 = sshll.u32 %s3, 4
      %s245 = int_to_ptr.hbm [resolvable:$true] %s244
      %247 = dma.vmem_to_hbm [thread:$0]  %s243, 16, %s245, [#allocation4]
    $region29: #{tpu_custom_call.1} parent=1 // pred_fallthru
      _
    // Predicated region
    $region30: #{tpu_custom_call.1} parent=1 // pred_check
      _
    $region31: #{tpu_custom_call.1} parent=1 // pred_check_branch
      %249 = sbr.rel (0) target = $region33
    $region32: #{tpu_custom_call.1} parent=1 // pred_region
      %251 = dma.done [#allocation4], 16
    $region33: #{tpu_custom_call.1} parent=1 // pred_fallthru
      _
    %252 = vsyncpa [#allocation3], 1
    %253 = vsyncpa [#allocation6], 1
    %254 = vsyncpa [#allocation4], 1

</llo_original>
